<compile_context>
chip_gen: v6e
topology: v6e:2x2x1
jax: 0.10.0
libtpu: 0.0.40
codegen_flags: <defaults>
</compile_context>

<pallas_src>
import functools
import math

import jax
import jax.numpy as jnp
import numpy as np
from jax import lax
from jax.experimental import pallas as pl
from jax.experimental.pallas import tpu as pltpu


# ---------------------------------------------------------------------------
# Kernel 1: K/V projections, hoisted out of the per-q-tile attention kernel so
# the full-S GEMMs x_K @ W_K and x_V @ W_V run exactly once per batch element
# (not once per query tile).  bf16 in / bf16 out, f32 MXU accumulation.
# ---------------------------------------------------------------------------
def _kv_proj_kernel(xk_ref, xv_ref, wk_ref, wv_ref, kp_ref, vp_ref):
    f32 = jnp.float32
    kp_ref[0] = jnp.dot(xk_ref[0], wk_ref[...],
                        preferred_element_type=f32).astype(kp_ref.dtype)
    vp_ref[0] = jnp.dot(xv_ref[0], wv_ref[...],
                        preferred_element_type=f32).astype(vp_ref.dtype)


# ---------------------------------------------------------------------------
# Kernel 2: per-(batch, q-tile) attention:
#   Q-tile projection -> per-head softmax(Q K^T / sqrt(d_k) [masked]) @ V ->
#   single deep fc GEMM -> residual add -> LayerNorm (gamma=1, beta=0).
# ---------------------------------------------------------------------------
def _attn_kernel(*refs, n_heads, d_k, d_v, eps, use_mask):
    if use_mask:
        (xq_ref, kp_ref, vp_ref, mask_ref, wq_ref, wfc_ref,
         out_ref, ctx_ref) = refs
    else:
        xq_ref, kp_ref, vp_ref, wq_ref, wfc_ref, out_ref, ctx_ref = refs

    f32 = jnp.float32
    bf16 = jnp.bfloat16

    x_q = xq_ref[0]                      # [TQ, d_model] f32 (residual source)
    Kp = kp_ref[0]                       # [S, H*d_k] bf16 (pre-projected)
    Vp = vp_ref[0]                       # [S, H*d_v] bf16 (pre-projected)

    # Q projection for this tile only (each tile is projected exactly once,
    # so nothing is redundant across the grid).  The 1/sqrt(d_k) scale is
    # folded into Q once instead of into every [TQ, S] score matrix.
    scale = f32(1.0 / math.sqrt(d_k))
    Qp = (jnp.dot(x_q.astype(bf16), wq_ref[...],
                  preferred_element_type=f32) * scale).astype(bf16)

    if use_mask:
        # int8 {0,1} mask -> exact masked_fill(mask == 0, -1e9) terms,
        # computed once per grid step (keep preserves exact semantics even
        # for fully-masked rows).
        keep = mask_ref[0].astype(f32)           # [TQ, S]
        neg = (keep - 1.0) * f32(1e9)

    # Static unroll over heads.  NOTE: d_k/d_v < 128 makes these lane slices
    # unaligned (relayout copies); a 128-padded head-major layout would remove
    # them but is not needed at these sizes.
    for h in range(n_heads):
        Qh = Qp[:, h * d_k:(h + 1) * d_k]        # [TQ, d_k] bf16
        Kh = Kp[:, h * d_k:(h + 1) * d_k]        # [S,  d_k] bf16
        Vh = Vp[:, h * d_v:(h + 1) * d_v]        # [S,  d_v] bf16

        # Contract on the d_k axis of both operands: no explicit K transpose.
        s = lax.dot_general(Qh, Kh, (((1,), (1,)), ((), ())),
                            preferred_element_type=f32)      # [TQ, S]
        if use_mask:
            s = s * keep + neg                   # exact masked_fill semantics

        m = jnp.max(s, axis=-1, keepdims=True)
        e = jnp.exp(s - m)
        denom = jnp.sum(e, axis=-1, keepdims=True)
        attn = e * pl.reciprocal(denom, approx=True)          # EUP slot

        ctx_h = jnp.dot(attn.astype(bf16), Vh,
                        preferred_element_type=f32)           # [TQ, d_v]
        ctx_ref[:, h * d_v:(h + 1) * d_v] = ctx_h.astype(bf16)

    # One deep (K = H*d_v) output-projection GEMM instead of H shallow ones.
    out = jnp.dot(ctx_ref[...], wfc_ref[...],
                  preferred_element_type=f32)                 # [TQ, d_model]

    # Residual + LayerNorm(d_model) in f32 (fresh nn.LayerNorm: gamma=1,
    # beta=0, eps=1e-5).
    y = out + x_q
    mean = jnp.mean(y, axis=-1, keepdims=True)
    var = jnp.mean(jnp.square(y - mean), axis=-1, keepdims=True)
    out_ref[0] = ((y - mean) * lax.rsqrt(var + eps)).astype(out_ref.dtype)


def _vmem_limit_bytes():
    """Per-generation VMEM budget with headroom (v7x has 64 MiB/TC, v5e/v6e
    have 128 MiB) instead of a hard-coded 64 MiB."""
    cap = None
    try:
        cap = getattr(pltpu.get_tpu_info(), "vmem_capacity_bytes", None)
    except Exception:
        cap = None
    if cap is None:
        try:
            kind = jax.devices()[0].device_kind.lower()
        except Exception:
            kind = ""
        cap = 64 * 2**20 if "v7" in kind else 128 * 2**20
    # Leave ~25% headroom for compiler internal scratch / temporaries.
    return max(32 * 2**20, (int(cap) * 3) // 4)


def _pick_tile(S):
    """Sequence-tile size: full S for moderate lengths, else the largest
    128-multiple divisor so big sequences never hold full [S, S] scores."""
    if S <= 1024:
        return S
    for t in (1024, 512, 256, 128):
        if S % t == 0:
            return t
    # TODO(synk): pad ragged long sequences to a 128 multiple (and mask the
    # padding) instead of falling back to a single full-S tile; for very long
    # S on v7x a flash-style KV-tile grid axis would be needed.
    return S


def multi_head_attention(input_Q, input_K, input_V, attn_mask,
                         W_Q, W_K, W_V, W_fc, *, n_heads, d_k, d_v,
                         q_block=None):
    B, S, d_model = input_Q.shape
    bf16 = jnp.bfloat16

    cparams = pltpu.CompilerParams(
        dimension_semantics=("parallel", "parallel"),
        vmem_limit_bytes=_vmem_limit_bytes())

    # Weights and K/V activations only ever feed bf16 MXU operands -> ship
    # them bf16 across the pallas_call boundary (half the DMA / VMEM).
    wq = W_Q.astype(bf16)
    wk = W_K.astype(bf16)
    wv = W_V.astype(bf16)
    wfc = W_fc.astype(bf16)
    xk = input_K.astype(bf16)
    xv = input_V.astype(bf16)

    tile = _pick_tile(S) if q_block is None else q_block
    q_block = tile
    assert S % q_block == 0, "seq length must be divisible by q_block"

    # --- Kernel 1: K/V projections, once per batch element -----------------
    kv_grid_spec = pltpu.PrefetchScalarGridSpec(
        num_scalar_prefetch=0,
        grid=(B, S // tile),
        in_specs=[
            pl.BlockSpec((1, tile, d_model), lambda b, s: (b, s, 0)),       # x_K bf16
            pl.BlockSpec((1, tile, d_model), lambda b, s: (b, s, 0)),       # x_V bf16
            pl.BlockSpec((d_model, n_heads * d_k), lambda b, s: (0, 0)),    # W_K bf16
            pl.BlockSpec((d_model, n_heads * d_v), lambda b, s: (0, 0)),    # W_V bf16
        ],
        out_specs=[
            pl.BlockSpec((1, tile, n_heads * d_k), lambda b, s: (b, s, 0)),
            pl.BlockSpec((1, tile, n_heads * d_v), lambda b, s: (b, s, 0)),
        ],
    )
    k_proj, v_proj = pl.pallas_call(
        _kv_proj_kernel,
        out_shape=(jax.ShapeDtypeStruct((B, S, n_heads * d_k), bf16),
                   jax.ShapeDtypeStruct((B, S, n_heads * d_v), bf16)),
        grid_spec=kv_grid_spec,
        compiler_params=cparams,
    )(xk, xv, wk, wv)

    # --- Kernel 2: attention + fc + residual + LayerNorm --------------------
    use_mask = attn_mask is not None

    in_specs = [
        pl.BlockSpec((1, q_block, d_model), lambda b, q: (b, q, 0)),         # x_Q f32
        pl.BlockSpec((1, S, n_heads * d_k), lambda b, q: (b, 0, 0)),         # K proj bf16
        pl.BlockSpec((1, S, n_heads * d_v), lambda b, q: (b, 0, 0)),         # V proj bf16
    ]
    args = [input_Q, k_proj, v_proj]
    if use_mask:
        # int8 mask: 4x less DMA than f32, no float-equality inside the kernel.
        mask = (attn_mask != 0).astype(jnp.int8)
        in_specs.append(pl.BlockSpec((1, q_block, S), lambda b, q: (b, q, 0)))
        args.append(mask)
    in_specs += [
        pl.BlockSpec((d_model, n_heads * d_k), lambda b, q: (0, 0)),         # W_Q bf16
        pl.BlockSpec((n_heads * d_v, d_model), lambda b, q: (0, 0)),         # W_fc bf16
    ]
    args += [wq, wfc]

    kernel = functools.partial(_attn_kernel, n_heads=n_heads, d_k=d_k,
                               d_v=d_v, eps=1e-5, use_mask=use_mask)

    grid_spec = pltpu.PrefetchScalarGridSpec(
        num_scalar_prefetch=0,
        grid=(B, S // q_block),
        in_specs=in_specs,
        out_specs=pl.BlockSpec((1, q_block, d_model), lambda b, q: (b, q, 0)),
        scratch_shapes=[pltpu.VMEM((q_block, n_heads * d_v), bf16)],
    )

    return pl.pallas_call(
        kernel,
        out_shape=jax.ShapeDtypeStruct((B, S, d_model), jnp.float32),
        grid_spec=grid_spec,
        compiler_params=cparams,
    )(*args)


def _reference(input_Q, input_K, input_V, attn_mask,
               W_Q, W_K, W_V, W_fc, n_heads, d_k, d_v):
    """Pure-JAX f32 reference mirroring the PyTorch forward."""
    B, S, d_model = input_Q.shape
    Q = (input_Q @ W_Q).reshape(B, S, n_heads, d_k).transpose(0, 2, 1, 3)
    K = (input_K @ W_K).reshape(B, S, n_heads, d_k).transpose(0, 2, 1, 3)
    V = (input_V @ W_V).reshape(B, S, n_heads, d_v).transpose(0, 2, 1, 3)
    scores = jnp.einsum("bhqd,bhkd->bhqk", Q, K) / np.sqrt(d_k)
    if attn_mask is not None:
        m = jnp.broadcast_to(attn_mask[:, None, :, :], scores.shape)
        scores = jnp.where(m == 0.0, -1e9, scores)
    attn = jax.nn.softmax(scores, axis=-1)
    ctx = jnp.einsum("bhqk,bhkd->bhqd", attn, V)
    ctx = ctx.transpose(0, 2, 1, 3).reshape(B, S, n_heads * d_v)
    out = ctx @ W_fc + input_Q
    mean = jnp.mean(out, axis=-1, keepdims=True)
    var = jnp.mean(jnp.square(out - mean), axis=-1, keepdims=True)
    return (out - mean) / jnp.sqrt(var + 1e-5)


if __name__ == "__main__":
    B, S, d_model, n_heads, d_k, d_v = 2, 8, 32, 4, 8, 8

    key = jax.random.PRNGKey(0)
    k1, k2, k3, k4, k5, k6, k7 = jax.random.split(key, 7)

    input_Q = jax.random.normal(k1, (B, S, d_model), jnp.float32)
    input_K = jax.random.normal(k2, (B, S, d_model), jnp.float32)
    input_V = jax.random.normal(k3, (B, S, d_model), jnp.float32)

    # Deterministic parameter init (nn.Linear shapes, bias=False), stored [in, out].
    scale = 1.0 / math.sqrt(d_model)
    W_Q = jax.random.normal(k4, (d_model, n_heads * d_k), jnp.float32) * scale
    W_K = jax.random.normal(k5, (d_model, n_heads * d_k), jnp.float32) * scale
    W_V = jax.random.normal(k6, (d_model, n_heads * d_v), jnp.float32) * scale
    W_fc = jax.random.normal(k7, (n_heads * d_v, d_model), jnp.float32) * \
        (1.0 / math.sqrt(n_heads * d_v))

    # Causal-style mask (exercises the masked_fill path).
    attn_mask = jnp.broadcast_to(
        jnp.tril(jnp.ones((S, S), jnp.float32)), (B, S, S))

    # Masked path.
    out = multi_head_attention(input_Q, input_K, input_V, attn_mask,
                               W_Q, W_K, W_V, W_fc,
                               n_heads=n_heads, d_k=d_k, d_v=d_v)
    out = jax.block_until_ready(out)
    ref = _reference(input_Q, input_K, input_V, attn_mask,
                     W_Q, W_K, W_V, W_fc, n_heads, d_k, d_v)
    # Kernel runs matmuls in bf16 (f32 accumulate) + approx reciprocal in the
    # softmax denominator, so compare with a bf16-appropriate tolerance.
    np.testing.assert_allclose(np.asarray(out), np.asarray(ref),
                               rtol=3e-2, atol=8e-2)

    # No-mask path (specialized kernel variant, no S^2 ones tensor).
    out_nm = multi_head_attention(input_Q, input_K, input_V, None,
                                  W_Q, W_K, W_V, W_fc,
                                  n_heads=n_heads, d_k=d_k, d_v=d_v)
    out_nm = jax.block_until_ready(out_nm)
    ref_nm = _reference(input_Q, input_K, input_V, None,
                        W_Q, W_K, W_V, W_fc, n_heads, d_k, d_v)
    np.testing.assert_allclose(np.asarray(out_nm), np.asarray(ref_nm),
                               rtol=3e-2, atol=8e-2)

    print("KERNEL_OK")
</pallas_src>

<mosaic_0001>
module attributes {stable_mosaic.version = 11 : i64} {
  func.func @_kv_proj_kernel(%arg0: i32, %arg1: i32, %arg2: memref<1x8x32xbf16, #tpu.memory_space<vmem>>, %arg3: memref<1x8x32xbf16, #tpu.memory_space<vmem>>, %arg4: memref<32x32xbf16, #tpu.memory_space<vmem>>, %arg5: memref<32x32xbf16, #tpu.memory_space<vmem>>, %arg6: memref<1x8x32xbf16, #tpu.memory_space<vmem>>, %arg7: memref<1x8x32xbf16, #tpu.memory_space<vmem>>) attributes {dimension_semantics = [#tpu.dimension_semantics<parallel>, #tpu.dimension_semantics<parallel>], iteration_bounds = array<i64: 2, 1>, scalar_prefetch = 0 : i64, scratch_operands = 0 : i64, tpu.core_type = #tpu.core_type<tc>, window_params = [{transform_indices = @transform_0, window_bounds = array<i64: 1, 8, 32>}, {transform_indices = @transform_1, window_bounds = array<i64: 1, 8, 32>}, {pipeline_mode = #tpu.pipeline_mode<synchronous>, transform_indices = @transform_2, window_bounds = array<i64: 32, 32>}, {pipeline_mode = #tpu.pipeline_mode<synchronous>, transform_indices = @transform_3, window_bounds = array<i64: 32, 32>}, {transform_indices = @transform_4, window_bounds = array<i64: 1, 8, 32>}, {transform_indices = @transform_5, window_bounds = array<i64: 1, 8, 32>}]} {
    %c0 = arith.constant 0 : index
    %c0_0 = arith.constant 0 : index
    %c0_1 = arith.constant 0 : index
    %0 = vector.load %arg2[%c0, %c0_0, %c0_1] : memref<1x8x32xbf16, #tpu.memory_space<vmem>>, vector<1x8x32xbf16>
    %1 = vector.shape_cast %0 : vector<1x8x32xbf16> to vector<8x32xbf16>
    %c0_2 = arith.constant 0 : index
    %c0_3 = arith.constant 0 : index
    %2 = vector.load %arg4[%c0_2, %c0_3] : memref<32x32xbf16, #tpu.memory_space<vmem>>, vector<32x32xbf16>
    %cst = arith.constant dense<0.000000e+00> : vector<8x32xf32>
    %3 = tpu.matmul %1, %2, %cst {dimension_numbers = #tpu.dot_dimension_numbers<[1], [0], [0], [1], [0, 0, 1, 1], [], []>} : vector<8x32xbf16>, vector<32x32xbf16>, vector<8x32xf32> -> vector<8x32xf32>
    %4 = arith.truncf %3 : vector<8x32xf32> to vector<8x32xbf16>
    %c0_4 = arith.constant 0 : index
    %c0_5 = arith.constant 0 : index
    %c0_6 = arith.constant 0 : index
    %5 = vector.load %arg6[%c0_4, %c0_5, %c0_6] : memref<1x8x32xbf16, #tpu.memory_space<vmem>>, vector<1x8x32xbf16>
    %6 = vector.shape_cast %5 : vector<1x8x32xbf16> to vector<8x32xbf16>
    %7 = vector.shape_cast %4 : vector<8x32xbf16> to vector<1x8x32xbf16>
    tpu.vector_store %arg6[%c0_4, %c0_5, %c0_6], %7 {strides = array<i32>} : memref<1x8x32xbf16, #tpu.memory_space<vmem>>, vector<1x8x32xbf16>,
    %c0_7 = arith.constant 0 : index
    %c0_8 = arith.constant 0 : index
    %c0_9 = arith.constant 0 : index
    %8 = vector.load %arg3[%c0_7, %c0_8, %c0_9] : memref<1x8x32xbf16, #tpu.memory_space<vmem>>, vector<1x8x32xbf16>
    %9 = vector.shape_cast %8 : vector<1x8x32xbf16> to vector<8x32xbf16>
    %c0_10 = arith.constant 0 : index
    %c0_11 = arith.constant 0 : index
    %10 = vector.load %arg5[%c0_10, %c0_11] : memref<32x32xbf16, #tpu.memory_space<vmem>>, vector<32x32xbf16>
    %cst_12 = arith.constant dense<0.000000e+00> : vector<8x32xf32>
    %11 = tpu.matmul %9, %10, %cst_12 {dimension_numbers = #tpu.dot_dimension_numbers<[1], [0], [0], [1], [0, 0, 1, 1], [], []>} : vector<8x32xbf16>, vector<32x32xbf16>, vector<8x32xf32> -> vector<8x32xf32>
    %12 = arith.truncf %11 : vector<8x32xf32> to vector<8x32xbf16>
    %c0_13 = arith.constant 0 : index
    %c0_14 = arith.constant 0 : index
    %c0_15 = arith.constant 0 : index
    %13 = vector.load %arg7[%c0_13, %c0_14, %c0_15] : memref<1x8x32xbf16, #tpu.memory_space<vmem>>, vector<1x8x32xbf16>
    %14 = vector.shape_cast %13 : vector<1x8x32xbf16> to vector<8x32xbf16>
    %15 = vector.shape_cast %12 : vector<8x32xbf16> to vector<1x8x32xbf16>
    tpu.vector_store %arg7[%c0_13, %c0_14, %c0_15], %15 {strides = array<i32>} : memref<1x8x32xbf16, #tpu.memory_space<vmem>>, vector<1x8x32xbf16>,
    return
  }
  func.func @transform_0(%arg0: i32, %arg1: i32) -> (i32, i32, i32) {
    %c0_i32 = arith.constant 0 : i32
    %c0_i32_0 = arith.constant 0 : i32
    return %arg0, %arg1, %c0_i32 : i32, i32, i32
  }
  func.func @transform_1(%arg0: i32, %arg1: i32) -> (i32, i32, i32) {
    %c0_i32 = arith.constant 0 : i32
    %c0_i32_0 = arith.constant 0 : i32
    return %arg0, %arg1, %c0_i32 : i32, i32, i32
  }
  func.func @transform_2(%arg0: i32, %arg1: i32) -> (i32, i32) {
    %c0_i32 = arith.constant 0 : i32
    %c0_i32_0 = arith.constant 0 : i32
    %c0_i32_1 = arith.constant 0 : i32
    return %c0_i32, %c0_i32_0 : i32, i32
  }
  func.func @transform_3(%arg0: i32, %arg1: i32) -> (i32, i32) {
    %c0_i32 = arith.constant 0 : i32
    %c0_i32_0 = arith.constant 0 : i32
    %c0_i32_1 = arith.constant 0 : i32
    return %c0_i32, %c0_i32_0 : i32, i32
  }
  func.func @transform_4(%arg0: i32, %arg1: i32) -> (i32, i32, i32) {
    %c0_i32 = arith.constant 0 : i32
    %c0_i32_0 = arith.constant 0 : i32
    return %arg0, %arg1, %c0_i32 : i32, i32, i32
  }
  func.func @transform_5(%arg0: i32, %arg1: i32) -> (i32, i32, i32) {
    %c0_i32 = arith.constant 0 : i32
    %c0_i32_0 = arith.constant 0 : i32
    return %arg0, %arg1, %c0_i32 : i32, i32, i32
  }
}

</mosaic_0001>

<llo_original>
// kernel: tpu_custom_call.1
$region0: #{tpu_custom_call.1}
  #allocation0 [shape = 'u32[]', space=smem, size = 0x4, offset = 0x4, fixed_abs, tag = 'smem constant byte address 0x4 - core index']
  #allocation1 [shape = 'u32[144,128]{1,0:T(1,128)}', space=vmem, size = 0x12000, scoped, tag = 'internal scratch']
  %s0 = inlined_call_operand.hbm [shape: bf16[2,8,32], index: 0, kind: input, shape index: {}]
  %s1 = inlined_call_operand.hbm [shape: bf16[2,8,32], index: 1, kind: input, shape index: {}]
  %s2 = inlined_call_operand.hbm [shape: bf16[32,32], index: 2, kind: input, shape index: {}]
  %s3 = inlined_call_operand.hbm [shape: bf16[32,32], index: 3, kind: input, shape index: {}]
  %s4 = inlined_call_operand.hbm [shape: bf16[2,8,32], index: 4, kind: output, shape index: {0}]
  %s5 = inlined_call_operand.hbm [shape: bf16[2,8,32], index: 5, kind: output, shape index: {1}]
  %6 = xla_tuple %s4, %s5
  %s7 = sld [smem:[#allocation0]]
  $region73: #{tpu_custom_call.1} parent=0
    _
  %s9 = ssub.s32 1, %s7
  %s10 = scalar_select 0, %s9, %s7
  $region1: #{tpu_custom_call.1} parent=0
    #allocation2 [shape = 'u8[4096]{0}', space=vmem, size = 0x1000, scoped, tag = 'input window, operand 0']
    #allocation3 [shape = 's32[2]{0}', space=sflag, size = 0x8, scoped, tag = 'scoped memory for tpu_custom_call.1']
    #allocation4 [shape = 's32[2]{0}', space=sflag, size = 0x8, scoped, tag = 'scoped memory for tpu_custom_call.1']
    #allocation5 [shape = 'u8[4096]{0}', space=vmem, size = 0x1000, scoped, tag = 'input window, operand 1']
    #allocation6 [shape = 's32[2]{0}', space=sflag, size = 0x8, scoped, tag = 'scoped memory for tpu_custom_call.1']
    #allocation7 [shape = 'u8[8192]{0}', space=vmem, size = 0x2000, scoped, tag = 'input window, operand 2, single buffered']
    #allocation8 [shape = 'u8[8192]{0}', space=vmem, size = 0x2000, scoped, tag = 'input window, operand 3, single buffered']
    #allocation9 [shape = 's32[1]{0}', space=sflag, size = 0x4, scoped, tag = 'scoped memory for tpu_custom_call.1']
    #allocation10 [shape = 'u8[4096]{0}', space=vmem, size = 0x1000, scoped, tag = 'output window, operand 0']
    #allocation11 [shape = 'u8[4096]{0}', space=vmem, size = 0x1000, scoped, tag = 'output window, operand 1']
    #allocation12 [shape = 's32[2]{0}', space=sflag, size = 0x8, scoped, tag = 'scoped memory for tpu_custom_call.1']
    %11 = vsyncpa [#allocation3], 0
    %s12 = scalar_lea.sflag [#allocation3], 1
    %13 = vsyncpa %s12, 0
    %14 = vsyncpa [#allocation6], 0
    %s15 = scalar_lea.sflag [#allocation6], 1
    %16 = vsyncpa %s15, 0
    %17 = vsyncpa [#allocation9], 0
    %18 = vsyncpa [#allocation4], 0
    %s19 = scalar_lea.sflag [#allocation4], 1
    %20 = vsyncpa %s19, 0
    %21 = vsyncpa [#allocation12], 0
    %s22 = scalar_lea.sflag [#allocation12], 1
    %23 = vsyncpa %s22, 0
    loop: start=0, step=1, limit=4
    $region2: #{tpu_custom_call.1} parent=1 // loop_pre_header
      _
    $region3: #{tpu_custom_call.1} parent=1 // loop_header
      %s25 = sphi 0, %s29
      %p26 = scmp.ge.s32.totalorder %s25, 4
      %s32 = sphi 0, %s44
      %s33 = sphi 0, %s40
      %s34 = sphi 0, %s32
      %s35 = sphi 0, %s33
      %s36 = sphi 0, %s34
      %s37 = sphi 0, %s35
      %s49 = sphi 0, %s51
      %s52 = sphi 0, %s49
      %s53 = sphi 0, %s52
      %s69 = sphi 0, %s53
      %s77 = sphi 0, %s79
      %s80 = sphi 0, %s77
      %s81 = sphi 0, %s80
      %s97 = sphi 0, %s81
      %s101 = sphi 0, %s101
      %s103 = sphi 0, %s101
      %s104 = sphi 0, %s103
      %s118 = sphi 0, %s104
      %s122 = sphi 0, %s122
      %s124 = sphi 0, %s122
      %s125 = sphi 0, %s124
      %s139 = sphi 0, %s125
      %s147 = sphi 0, %s149
      %s150 = sphi 0, %s147
      %s151 = sphi 0, %s150
      %s167 = sphi 0, %s151
      %s175 = sphi 0, %s177
      %s178 = sphi 0, %s175
      %s179 = sphi 0, %s178
      %s195 = sphi 0, %s179
    $region4: #{tpu_custom_call.1} parent=1 // loop_header_branch
      %28 = sbr.rel (%p26) target = $region8
    $region5: #{tpu_custom_call.1} parent=1 // loop_body
      %s30 = ssub.s32 %s25, 1
      %s31 = ssub.s32 %s25, 2
      %s38 = sadd.s32 1, %s33
      %p39 = scmp.ge.s32.totalorder %s38, 1
      %s40 = scalar_select %p39, 0, %s38
      %s41 = sadd.s32 1, %s32
      %s42 = scalar_select %p39, %s41, %s32
      %p43 = scmp.ge.s32.totalorder %s42, 2
      %s44 = scalar_select %p43, 0, %s42
      %s45 = ssub.s32 %s32, %s44
      %s46 = ssub.s32 %s33, %s40
      %s47 = sor.u32 %s45, %s46
      %p48 = scmp.eq.s32.totalorder %s47, 0
      %s50 = sadd.s32 %s49, 1
      %s51 = scalar_select %p48, %s49, %s50
      %p54 = pneg %p48
      %p55 = scmp.eq.s32.totalorder %s25, 1
      %p56 = por %p54, %p55
      %p57 = scmp.ne.s32.totalorder %s49, %s52
      %p58 = scmp.eq.s32.totalorder %s25, 0
      %p59 = por %p57, %p58
      %p60 = scmp.ne.s32.totalorder %s49, %s52
      %p61 = scmp.eq.s32.totalorder %s30, 1
      %p62 = por %p60, %p61
      %p63 = scmp.ne.s32.totalorder %s52, %s53
      %p64 = scmp.eq.s32.totalorder %s30, 0
      %p65 = por %p63, %p64
      %p66 = scmp.ne.s32.totalorder %s52, %s53
      %p67 = scmp.eq.s32.totalorder %s31, 1
      %p68 = por %p66, %p67
      %p70 = scmp.ne.s32.totalorder %s53, %s69
      %p71 = scmp.eq.s32.totalorder %s31, 0
      %p72 = por %p70, %p71
      %s73 = ssub.s32 %s32, %s44
      %s74 = ssub.s32 %s33, %s40
      %s75 = sor.u32 %s73, %s74
      %p76 = scmp.eq.s32.totalorder %s75, 0
      %s78 = sadd.s32 %s77, 1
      %s79 = scalar_select %p76, %s77, %s78
      %p82 = pneg %p76
      %p83 = scmp.eq.s32.totalorder %s25, 1
      %p84 = por %p82, %p83
      %p85 = scmp.ne.s32.totalorder %s77, %s80
      %p86 = scmp.eq.s32.totalorder %s25, 0
      %p87 = por %p85, %p86
      %p88 = scmp.ne.s32.totalorder %s77, %s80
      %p89 = scmp.eq.s32.totalorder %s30, 1
      %p90 = por %p88, %p89
      %p91 = scmp.ne.s32.totalorder %s80, %s81
      %p92 = scmp.eq.s32.totalorder %s30, 0
      %p93 = por %p91, %p92
      %p94 = scmp.ne.s32.totalorder %s80, %s81
      %p95 = scmp.eq.s32.totalorder %s31, 1
      %p96 = por %p94, %p95
      %p98 = scmp.ne.s32.totalorder %s81, %s97
      %p99 = scmp.eq.s32.totalorder %s31, 0
      %p100 = por %p98, %p99
      %s102 = sadd.s32 %s101, 1
      %p105 = scmp.eq.s32.totalorder %s25, 1
      %p106 = scmp.ne.s32.totalorder %s101, %s103
      %p107 = scmp.eq.s32.totalorder %s25, 0
      %p108 = por %p106, %p107
      %p109 = scmp.ne.s32.totalorder %s101, %s103
      %p110 = scmp.eq.s32.totalorder %s30, 1
      %p111 = por %p109, %p110
      %p112 = scmp.ne.s32.totalorder %s103, %s104
      %p113 = scmp.eq.s32.totalorder %s30, 0
      %p114 = por %p112, %p113
      %p115 = scmp.ne.s32.totalorder %s103, %s104
      %p116 = scmp.eq.s32.totalorder %s31, 1
      %p117 = por %p115, %p116
      %p119 = scmp.ne.s32.totalorder %s104, %s118
      %p120 = scmp.eq.s32.totalorder %s31, 0
      %p121 = por %p119, %p120
      %s123 = sadd.s32 %s122, 1
      %p126 = scmp.eq.s32.totalorder %s25, 1
      %p127 = scmp.ne.s32.totalorder %s122, %s124
      %p128 = scmp.eq.s32.totalorder %s25, 0
      %p129 = por %p127, %p128
      %p130 = scmp.ne.s32.totalorder %s122, %s124
      %p131 = scmp.eq.s32.totalorder %s30, 1
      %p132 = por %p130, %p131
      %p133 = scmp.ne.s32.totalorder %s124, %s125
      %p134 = scmp.eq.s32.totalorder %s30, 0
      %p135 = por %p133, %p134
      %p136 = scmp.ne.s32.totalorder %s124, %s125
      %p137 = scmp.eq.s32.totalorder %s31, 1
      %p138 = por %p136, %p137
      %p140 = scmp.ne.s32.totalorder %s125, %s139
      %p141 = scmp.eq.s32.totalorder %s31, 0
      %p142 = por %p140, %p141
      %s143 = ssub.s32 %s32, %s44
      %s144 = ssub.s32 %s33, %s40
      %s145 = sor.u32 %s143, %s144
      %p146 = scmp.eq.s32.totalorder %s145, 0
      %s148 = sadd.s32 %s147, 1
      %s149 = scalar_select %p146, %s147, %s148
      %p152 = pneg %p146
      %p153 = scmp.eq.s32.totalorder %s25, 1
      %p154 = por %p152, %p153
      %p155 = scmp.ne.s32.totalorder %s147, %s150
      %p156 = scmp.eq.s32.totalorder %s25, 0
      %p157 = por %p155, %p156
      %p158 = scmp.ne.s32.totalorder %s147, %s150
      %p159 = scmp.eq.s32.totalorder %s30, 1
      %p160 = por %p158, %p159
      %p161 = scmp.ne.s32.totalorder %s150, %s151
      %p162 = scmp.eq.s32.totalorder %s30, 0
      %p163 = por %p161, %p162
      %p164 = scmp.ne.s32.totalorder %s150, %s151
      %p165 = scmp.eq.s32.totalorder %s31, 1
      %p166 = por %p164, %p165
      %p168 = scmp.ne.s32.totalorder %s151, %s167
      %p169 = scmp.eq.s32.totalorder %s31, 0
      %p170 = por %p168, %p169
      %s171 = ssub.s32 %s32, %s44
      %s172 = ssub.s32 %s33, %s40
      %s173 = sor.u32 %s171, %s172
      %p174 = scmp.eq.s32.totalorder %s173, 0
      %s176 = sadd.s32 %s175, 1
      %s177 = scalar_select %p174, %s175, %s176
      %p180 = pneg %p174
      %p181 = scmp.eq.s32.totalorder %s25, 1
      %p182 = por %p180, %p181
      %p183 = scmp.ne.s32.totalorder %s175, %s178
      %p184 = scmp.eq.s32.totalorder %s25, 0
      %p185 = por %p183, %p184
      %p186 = scmp.ne.s32.totalorder %s175, %s178
      %p187 = scmp.eq.s32.totalorder %s30, 1
      %p188 = por %p186, %p187
      %p189 = scmp.ne.s32.totalorder %s178, %s179
      %p190 = scmp.eq.s32.totalorder %s30, 0
      %p191 = por %p189, %p190
      %p192 = scmp.ne.s32.totalorder %s178, %s179
      %p193 = scmp.eq.s32.totalorder %s31, 1
      %p194 = por %p192, %p193
      %p196 = scmp.ne.s32.totalorder %s179, %s195
      %p197 = scmp.eq.s32.totalorder %s31, 0
      %p198 = por %p196, %p197
      %p199 = scmp.le.s32.totalorder 1, %s25
      %p200 = scmp.lt.s32.totalorder %s25, 3
      %p201 = pnand %p199, %p200
      %p202 = pneg %p201
      // Predicated region
      $region9: #{tpu_custom_call.1} parent=5 // pred_check
        _
      $region10: #{tpu_custom_call.1} parent=5 // pred_check_branch
        %204 = sbr.rel (%p201) target = $region12
      $region11: #{tpu_custom_call.1} parent=5 // pred_region
        %s205 = ssub.s32 %s25, 1
        // Predicated region
        $region13: #{tpu_custom_call.1} parent=11 // pred_check
          %p206 = pneg %p114
        $region14: #{tpu_custom_call.1} parent=11 // pred_check_branch
          %208 = sbr.rel (%p206) target = $region16
        $region15: #{tpu_custom_call.1} parent=11 // pred_region
          %s210 = ssub.s32 256, 256
          %211 = vsyncadd [#allocation6], %s210
          %s212 = sshll.u32 [#allocation7], 4
          %s213 = int_to_ptr.vmem [resolvable:$true] %s212
          %218 = dma.hbm_to_vmem [thread:$0]  %s2, 256, %s213, [#allocation6], 64, 64, 4
        $region16: #{tpu_custom_call.1} parent=11 // pred_fallthru
          _
        // Predicated region
        $region17: #{tpu_custom_call.1} parent=11 // pred_check
          %p219 = pneg %p135
        $region18: #{tpu_custom_call.1} parent=11 // pred_check_branch
          %221 = sbr.rel (%p219) target = $region20
        $region19: #{tpu_custom_call.1} parent=11 // pred_region
          %s223 = ssub.s32 256, 256
          %224 = vsyncadd [#allocation9], %s223
          %s225 = sshll.u32 [#allocation8], 4
          %s226 = int_to_ptr.vmem [resolvable:$true] %s225
          %231 = dma.hbm_to_vmem [thread:$0]  %s3, 256, %s226, [#allocation9], 64, 64, 4
        $region20: #{tpu_custom_call.1} parent=11 // pred_fallthru
          _
      $region12: #{tpu_custom_call.1} parent=5 // pred_fallthru
        _
      %p232 = scmp.lt.s32.totalorder %s25, 2
      // Predicated region
      $region21: #{tpu_custom_call.1} parent=5 // pred_check
        %p233 = pneg %p232
      $region22: #{tpu_custom_call.1} parent=5 // pred_check_branch
        %235 = sbr.rel (%p233) target = $region24
      $region23: #{tpu_custom_call.1} parent=5 // pred_region
        // Predicated region
        $region25: #{tpu_custom_call.1} parent=23 // pred_check
          %p236 = pneg %p59
        $region26: #{tpu_custom_call.1} parent=23 // pred_check_branch
          %238 = sbr.rel (%p236) target = $region28
        $region27: #{tpu_custom_call.1} parent=23 // pred_region
          %s239 = sand.u32 %s49, 1
          %s240 = scalar_lea.sflag [#allocation3], %s239
          %s241 = sand.u32 %s49, 1
          %s242 = smul.addr %s241, 4
          %s243 = scalar_lea.vmem [#allocation2], %s242
          %s245 = ssub.s32 64, 64
          %246 = vsyncadd %s240, %s245
          %s247 = sadd.s32 %s33, %s32
          %s248 = smul.addr %s247, 64
          %s249 = scalar_lea.hbm %s0, %s248
          %s251 = sshll.u32 %s243, 4
          %s252 = int_to_ptr.vmem [resolvable:$true] %s251
          %254 = dma.hbm_to_vmem [thread:$0]  %s249, 64, %s252, %s240
        $region28: #{tpu_custom_call.1} parent=23 // pred_fallthru
          _
        // Predicated region
        $region29: #{tpu_custom_call.1} parent=23 // pred_check
          %p255 = pneg %p87
        $region30: #{tpu_custom_call.1} parent=23 // pred_check_branch
          %257 = sbr.rel (%p255) target = $region32
        $region31: #{tpu_custom_call.1} parent=23 // pred_region
          %s258 = sand.u32 %s25, 1
          %s259 = scalar_lea.sflag [#allocation6], %s258
          %s260 = sand.u32 %s77, 1
          %s261 = smul.addr %s260, 4
          %s262 = scalar_lea.vmem [#allocation5], %s261
          %s264 = ssub.s32 64, 64
          %265 = vsyncadd %s259, %s264
          %s266 = sadd.s32 %s33, %s32
          %s267 = smul.addr %s266, 64
          %s268 = scalar_lea.hbm %s1, %s267
          %s270 = sshll.u32 %s262, 4
          %s271 = int_to_ptr.vmem [resolvable:$true] %s270
          %273 = dma.hbm_to_vmem [thread:$0]  %s268, 64, %s271, %s259
        $region32: #{tpu_custom_call.1} parent=23 // pred_fallthru
          _
      $region24: #{tpu_custom_call.1} parent=5 // pred_fallthru
        _
      %p274 = scmp.le.s32.totalorder 1, %s25
      %p275 = scmp.lt.s32.totalorder %s25, 3
      %p276 = pnand %p274, %p275
      %p277 = pneg %p276
      // Predicated region
      $region33: #{tpu_custom_call.1} parent=5 // pred_check
        _
      $region34: #{tpu_custom_call.1} parent=5 // pred_check_branch
        %279 = sbr.rel (%p276) target = $region36
      $region35: #{tpu_custom_call.1} parent=5 // pred_region
        %s280 = ssub.s32 %s25, 1
        %s281 = sand.u32 %s52, 1
        %s282 = scalar_lea.sflag [#allocation3], %s281
        %s283 = sand.u32 %s52, 1
        %s284 = smul.addr %s283, 4
        %s285 = scalar_lea.vmem [#allocation2], %s284
        // Predicated region
        $region37: #{tpu_custom_call.1} parent=35 // pred_check
          %p286 = pneg %p65
        $region38: #{tpu_custom_call.1} parent=35 // pred_check_branch
          %288 = sbr.rel (%p286) target = $region40
        $region39: #{tpu_custom_call.1} parent=35 // pred_region
          %289 = dma.done %s282, 64
        $region40: #{tpu_custom_call.1} parent=35 // pred_fallthru
          _
        %s290 = sand.u32 %s30, 1
        %s291 = scalar_lea.sflag [#allocation6], %s290
        %s292 = sand.u32 %s80, 1
        %s293 = smul.addr %s292, 4
        %s294 = scalar_lea.vmem [#allocation5], %s293
        // Predicated region
        $region41: #{tpu_custom_call.1} parent=35 // pred_check
          %p295 = pneg %p93
        $region42: #{tpu_custom_call.1} parent=35 // pred_check_branch
          %297 = sbr.rel (%p295) target = $region44
        $region43: #{tpu_custom_call.1} parent=35 // pred_region
          %298 = dma.done %s291, 64
        $region44: #{tpu_custom_call.1} parent=35 // pred_fallthru
          _
        // Predicated region
        $region45: #{tpu_custom_call.1} parent=35 // pred_check
          %p299 = pneg %p114
        $region46: #{tpu_custom_call.1} parent=35 // pred_check_branch
          %301 = sbr.rel (%p299) target = $region48
        $region47: #{tpu_custom_call.1} parent=35 // pred_region
          %302 = dma.done [#allocation6], 256
        $region48: #{tpu_custom_call.1} parent=35 // pred_fallthru
          _
        // Predicated region
        $region49: #{tpu_custom_call.1} parent=35 // pred_check
          %p303 = pneg %p135
        $region50: #{tpu_custom_call.1} parent=35 // pred_check_branch
          %305 = sbr.rel (%p303) target = $region52
        $region51: #{tpu_custom_call.1} parent=35 // pred_region
          %306 = dma.done [#allocation9], 256
        $region52: #{tpu_custom_call.1} parent=35 // pred_fallthru
          _
        %s307 = sand.u32 %s52, 1
        %s308 = scalar_lea.sflag [#allocation3], %s307
        %s309 = sand.u32 %s52, 1
        %s310 = smul.addr %s309, 4
        %s311 = scalar_lea.vmem [#allocation2], %s310
        %p312 = pneg %p65
        %p313 = pneg %p62
        %s314 = sand.u32 %s30, 1
        %s315 = scalar_lea.sflag [#allocation6], %s314
        %s316 = sand.u32 %s80, 1
        %s317 = smul.addr %s316, 4
        %s318 = scalar_lea.vmem [#allocation5], %s317
        %p319 = pneg %p93
        %p320 = pneg %p90
        %p321 = pneg %p114
        %p322 = pneg %p111
        %p323 = pneg %p135
        %p324 = pneg %p132
        %p325 = pneg %p163
        %p326 = pneg %p160
        %s327 = sand.u32 %s150, 1
        %s328 = scalar_lea.sflag [#allocation4], %s327
        %s329 = sand.u32 %s150, 1
        %s330 = smul.addr %s329, 4
        %s331 = scalar_lea.vmem [#allocation10], %s330
        %p332 = pneg %p191
        %p333 = pneg %p188
        %s334 = sand.u32 %s178, 1
        %s335 = scalar_lea.sflag [#allocation12], %s334
        %s336 = sand.u32 %s178, 1
        %s337 = smul.addr %s336, 4
        %s338 = scalar_lea.vmem [#allocation11], %s337
        %v340 = vld [vmem:[%s285] sm:$0xf]
        %v341 = vld [vmem:[#allocation7] sm:$0xf]
        %v342 = vld [vmem:[#allocation7 + $0x4] sm:$0xf]
        %v343 = vld [vmem:[#allocation7 + $0x8] sm:$0xf]
        %v344 = vld [vmem:[#allocation7 + $0xc] sm:$0xf]
        %v349 = vunpack.c.l.b16 %v341
        %v350 = vunpack.c.l.b16 %v342
        %v351 = vunpack.c.l.b16 %v343
        %v352 = vunpack.c.l.b16 %v344
        %v353 = vpack.c.b16 %v350, %v349
        %v354 = vpack.c.b16 %v352, %v351
        %vm357 = vcmask 261120
        %v359 = vsel %vm357, %v340, 0
        %361 = vmatprep.subr.bf16.mxu0 0
        %362 = vmatpush1.bf16.msra.mxu0 0
        %363 = vmatprep.subr.bf16.mxu0 0
        %364 = vmatpush1.bf16.msra.mxu0 0
        %365 = vmatprep.subr.bf16.mxu0 0
        %366 = vmatpush1.bf16.msra.mxu0 0
        %367 = vmatprep.subr.bf16.mxu0 0
        %368 = vmatpush1.bf16.msra.mxu0 0
        %369 = vmatprep.subr.bf16.mxu0 0
        %370 = vmatpush1.bf16.msra.mxu0 0
        %371 = vmatprep.subr.bf16.mxu0 0
        %372 = vmatpush1.bf16.msra.mxu0 0
        %373 = vmatprep.subr.bf16.mxu0 0
        %374 = vmatpush1.bf16.msra.mxu0 %v354
        %375 = vmatprep.subr.bf16.mxu0 0
        %376 = vmatpush1.bf16.msra.mxu0 %v353
        %377 = vmatprep.subr.bf16.mxu0 0
        %378 = vmatpush2.bf16.msra.mxu0 0
        %379 = vmatprep.subr.bf16.mxu0 0
        %380 = vmatpush2.bf16.msra.mxu0 0
        %381 = vmatprep.subr.bf16.mxu0 0
        %382 = vmatpush2.bf16.msra.mxu0 0
        %383 = vmatprep.subr.bf16.mxu0 0
        %384 = vmatpush2.bf16.msra.mxu0 0
        %385 = vmatprep.subr.bf16.mxu0 0
        %386 = vmatpush2.bf16.msra.mxu0 0
        %387 = vmatprep.subr.bf16.mxu0 0
        %388 = vmatpush2.bf16.msra.mxu0 0
        %389 = vmatprep.subr.bf16.mxu0 0
        %390 = vmatpush2.bf16.msra.mxu0 0
        %391 = vmatprep.subr.bf16.mxu0 0
        %392 = vmatpush2.bf16.msra.mxu0 0
        %393 = vmatprep.mubr.bf16.mxu0 0
        %394 = vmatmul.mubr.bf16.gmra.mxu0 %v359
        %v395 = vpop.f32.mrf.mxu0
        %v396 = vadd.f32 0.0, %v395
        %v397 = vpop.f32.mrf.mxu0
        %v398 = vpop.f32.mrf.mxu0
        %v399 = vpop.f32.mrf.mxu0
        %400 = vdwg.mxu0
        %v401 = vpack.c.bf16 %v396, %v396
        %vm402 = vcmask 257024
        %403 = vst.msk [vmem:[%s331] sm:$0xf] %vm402, %v401
        %v404 = vld [vmem:[%s294] sm:$0xf]
        %v405 = vld [vmem:[#allocation8] sm:$0xf]
        %v406 = vld [vmem:[#allocation8 + $0x4] sm:$0xf]
        %v407 = vld [vmem:[#allocation8 + $0x8] sm:$0xf]
        %v408 = vld [vmem:[#allocation8 + $0xc] sm:$0xf]
        %v413 = vunpack.c.l.b16 %v405
        %v414 = vunpack.c.l.b16 %v406
        %v415 = vunpack.c.l.b16 %v407
        %v416 = vunpack.c.l.b16 %v408
        %v417 = vpack.c.b16 %v414, %v413
        %v418 = vpack.c.b16 %v416, %v415
        %v422 = vsel %vm357, %v404, 0
        %424 = vmatprep.subr.bf16.mxu0 0
        %425 = vmatpush1.bf16.msra.mxu0 0
        %426 = vmatprep.subr.bf16.mxu0 0
        %427 = vmatpush1.bf16.msra.mxu0 0
        %428 = vmatprep.subr.bf16.mxu0 0
        %429 = vmatpush1.bf16.msra.mxu0 0
        %430 = vmatprep.subr.bf16.mxu0 0
        %431 = vmatpush1.bf16.msra.mxu0 0
        %432 = vmatprep.subr.bf16.mxu0 0
        %433 = vmatpush1.bf16.msra.mxu0 0
        %434 = vmatprep.subr.bf16.mxu0 0
        %435 = vmatpush1.bf16.msra.mxu0 0
        %436 = vmatprep.subr.bf16.mxu0 0
        %437 = vmatpush1.bf16.msra.mxu0 %v418
        %438 = vmatprep.subr.bf16.mxu0 0
        %439 = vmatpush1.bf16.msra.mxu0 %v417
        %440 = vmatprep.subr.bf16.mxu0 0
        %441 = vmatpush2.bf16.msra.mxu0 0
        %442 = vmatprep.subr.bf16.mxu0 0
        %443 = vmatpush2.bf16.msra.mxu0 0
        %444 = vmatprep.subr.bf16.mxu0 0
        %445 = vmatpush2.bf16.msra.mxu0 0
        %446 = vmatprep.subr.bf16.mxu0 0
        %447 = vmatpush2.bf16.msra.mxu0 0
        %448 = vmatprep.subr.bf16.mxu0 0
        %449 = vmatpush2.bf16.msra.mxu0 0
        %450 = vmatprep.subr.bf16.mxu0 0
        %451 = vmatpush2.bf16.msra.mxu0 0
        %452 = vmatprep.subr.bf16.mxu0 0
        %453 = vmatpush2.bf16.msra.mxu0 0
        %454 = vmatprep.subr.bf16.mxu0 0
        %455 = vmatpush2.bf16.msra.mxu0 0
        %456 = vmatprep.mubr.bf16.mxu0 0
        %457 = vmatmul.mubr.bf16.gmra.mxu0 %v422
        %v458 = vpop.f32.mrf.mxu0
        %v459 = vadd.f32 0.0, %v458
        %v460 = vpop.f32.mrf.mxu0
        %v461 = vpop.f32.mrf.mxu0
        %v462 = vpop.f32.mrf.mxu0
        %463 = vdwg.mxu0
        %v464 = vpack.c.bf16 %v459, %v459
        %465 = vst.msk [vmem:[%s338] sm:$0xf] %vm402, %v464
        %s466 = sand.u32 %s150, 1
        %s467 = scalar_lea.sflag [#allocation4], %s466
        %s468 = sand.u32 %s150, 1
        %s469 = smul.addr %s468, 4
        %s470 = scalar_lea.vmem [#allocation10], %s469
        %s471 = sand.u32 %s178, 1
        %s472 = scalar_lea.sflag [#allocation12], %s471
        %s473 = sand.u32 %s178, 1
        %s474 = smul.addr %s473, 4
        %s475 = scalar_lea.vmem [#allocation11], %s474
        // Predicated region
        $region53: #{tpu_custom_call.1} parent=35 // pred_check
          %p476 = pneg %p160
        $region54: #{tpu_custom_call.1} parent=35 // pred_check_branch
          %478 = sbr.rel (%p476) target = $region56
        $region55: #{tpu_custom_call.1} parent=35 // pred_region
          %s480 = ssub.s32 64, 64
          %481 = vsyncadd %s467, %s480
          %s482 = sadd.s32 %s35, %s34
          %s483 = smul.addr %s482, 64
          %s484 = scalar_lea.hbm %s4, %s483
          %s486 = sshll.u32 %s470, 4
          %s487 = int_to_ptr.vmem [resolvable:$true] %s486
          %489 = dma.vmem_to_hbm [thread:$0]  %s487, 64, %s484, %s467
        $region56: #{tpu_custom_call.1} parent=35 // pred_fallthru
          _
        // Predicated region
        $region57: #{tpu_custom_call.1} parent=35 // pred_check
          %p490 = pneg %p188
        $region58: #{tpu_custom_call.1} parent=35 // pred_check_branch
          %492 = sbr.rel (%p490) target = $region60
        $region59: #{tpu_custom_call.1} parent=35 // pred_region
          %s494 = ssub.s32 64, 64
          %495 = vsyncadd %s472, %s494
          %s496 = sadd.s32 %s35, %s34
          %s497 = smul.addr %s496, 64
          %s498 = scalar_lea.hbm %s5, %s497
          %s500 = sshll.u32 %s475, 4
          %s501 = int_to_ptr.vmem [resolvable:$true] %s500
          %503 = dma.vmem_to_hbm [thread:$0]  %s501, 64, %s498, %s472
        $region60: #{tpu_custom_call.1} parent=35 // pred_fallthru
          _
      $region36: #{tpu_custom_call.1} parent=5 // pred_fallthru
        _
      %p504 = scmp.le.s32.totalorder 2, %s25
      // Predicated region
      $region61: #{tpu_custom_call.1} parent=5 // pred_check
        %p505 = pneg %p504
      $region62: #{tpu_custom_call.1} parent=5 // pred_check_branch
        %507 = sbr.rel (%p505) target = $region64
      $region63: #{tpu_custom_call.1} parent=5 // pred_region
        %s508 = ssub.s32 %s25, 2
        // Predicated region
        $region65: #{tpu_custom_call.1} parent=63 // pred_check
          %p509 = pneg %p166
        $region66: #{tpu_custom_call.1} parent=63 // pred_check_branch
          %511 = sbr.rel (%p509) target = $region68
        $region67: #{tpu_custom_call.1} parent=63 // pred_region
          %s512 = sand.u32 %s151, 1
          %s513 = scalar_lea.sflag [#allocation4], %s512
          %s514 = sand.u32 %s151, 1
          %s515 = smul.addr %s514, 4
          %s516 = scalar_lea.vmem [#allocation10], %s515
          %517 = dma.done %s513, 64
        $region68: #{tpu_custom_call.1} parent=63 // pred_fallthru
          _
        // Predicated region
        $region69: #{tpu_custom_call.1} parent=63 // pred_check
          %p518 = pneg %p194
        $region70: #{tpu_custom_call.1} parent=63 // pred_check_branch
          %520 = sbr.rel (%p518) target = $region72
        $region71: #{tpu_custom_call.1} parent=63 // pred_region
          %s521 = sand.u32 %s179, 1
          %s522 = scalar_lea.sflag [#allocation12], %s521
          %s523 = sand.u32 %s179, 1
          %s524 = smul.addr %s523, 4
          %s525 = scalar_lea.vmem [#allocation11], %s524
          %526 = dma.done %s522, 64
        $region72: #{tpu_custom_call.1} parent=63 // pred_fallthru
          _
      $region64: #{tpu_custom_call.1} parent=5 // pred_fallthru
        _
    $region6: #{tpu_custom_call.1} parent=1 // loop_footer
      %s29 = sadd.s32 1, %s25
    $region7: #{tpu_custom_call.1} parent=1 // loop_footer_branch
      %24 = sbr.rel target = $region3
    $region8: #{tpu_custom_call.1} parent=1 // loop_exit
      _
    %527 = vsyncpa [#allocation3], 1
    %s528 = scalar_lea.sflag [#allocation3], 1
    %529 = vsyncpa %s528, 1
    %530 = vsyncpa [#allocation6], 1
    %s531 = scalar_lea.sflag [#allocation6], 1
    %532 = vsyncpa %s531, 1
    %533 = vsyncpa [#allocation9], 1
    %534 = vsyncpa [#allocation4], 1
    %s535 = scalar_lea.sflag [#allocation4], 1
    %536 = vsyncpa %s535, 1
    %537 = vsyncpa [#allocation12], 1
    %s538 = scalar_lea.sflag [#allocation12], 1
    %539 = vsyncpa %s538, 1

</llo_original>
